<compile_context>
chip_gen: v5e
topology: v5e:2x2
jax: 0.10.0
libtpu: 0.0.40
codegen_flags: <defaults>
</compile_context>

<pallas_src>
import jax
import jax.numpy as jnp
from jax.experimental import pallas as pl
from jax.experimental.pallas import tpu as pltpu


# -----------------------------------------------------------------------------
# Fused GCN + ReLU + LSTM kernel (single grid step, whole problem in VMEM).
# -----------------------------------------------------------------------------
def _fused_cd_gcn_kernel(a_ref, x_ref, wg_ref, bg_ref, wih_ref, whh_ref, bl_ref,
                         o_ref, gx_scr):
    # a_ref: (T,N,N)  x_ref: (T,N,F)  wg_ref: (F,H)  bg_ref: (1,H)
    # wih_ref/whh_ref: (H,4H)  bl_ref: (1,4H)  o_ref: (T,N,H)  gx_scr: (T,N,4H)
    T, N, F = x_ref.shape
    H = wg_ref.shape[1]

    # ---- Stage 1: time-batched GCN feature transform (one (T*N,F)@(F,H) matmul) ----
    xw = jnp.dot(x_ref[...].reshape(T * N, F), wg_ref[...],
                 preferred_element_type=jnp.float32)                      # (T*N, H)

    # ---- Stage 2: per-timestep propagation A_hat_t @ (X_t W), bias + ReLU once ----
    ax = jnp.einsum("tnm,tmh->tnh", a_ref[...], xw.reshape(T, N, H),
                    preferred_element_type=jnp.float32)                   # (T, N, H)
    h_gcn = jnp.maximum(ax.reshape(T * N, H) + bg_ref[...], 0.0)          # (T*N, H)

    # ---- Stage 3: time-batched LSTM input projection + combined biases (hoisted) ----
    gates_x = jnp.dot(h_gcn, wih_ref[...],
                      preferred_element_type=jnp.float32) + bl_ref[...]   # (T*N, 4H)
    gx_scr[...] = gates_x.reshape(T, N, 4 * H)

    # ---- Stage 4: sequential recurrence; only h @ W_hh on the critical path ----
    # PyTorch gate order [i, f, g, o]: lanes [2H, 3H) take tanh, the rest sigmoid.
    lane = jax.lax.broadcasted_iota(jnp.int32, (N, 4 * H), 1)
    g_mask = (lane >= 2 * H) & (lane < 3 * H)

    def step(t, carry):
        h, c = carry
        gates = gx_scr[t] + jnp.dot(h, whh_ref[...],
                                    preferred_element_type=jnp.float32)   # (N, 4H)
        # Two full-width transcendental passes instead of four quarter-width ones.
        act = jnp.where(g_mask, jnp.tanh(gates), jax.nn.sigmoid(gates))
        i = act[:, 0 * H:1 * H]
        f = act[:, 1 * H:2 * H]
        g = act[:, 2 * H:3 * H]
        o = act[:, 3 * H:4 * H]
        c_new = f * c + i * g
        h_new = o * jnp.tanh(c_new)
        o_ref[t] = h_new          # VMEM store; single HBM writeback at kernel end
        return h_new, c_new

    h0 = jnp.zeros((N, H), jnp.float32)
    c0 = jnp.zeros((N, H), jnp.float32)
    jax.lax.fori_loop(0, T, step, (h0, c0), unroll=True)


def cd_gcn_forward(a_hat, x, params):
    T, N, F = x.shape
    H = params["w_gcn"].shape[1]
    assert N % 8 == 0, "node count must be a multiple of the 8-sublane tile"
    # TODO(synk): pad N (and row-tile dense A_hat) for large / non-multiple-of-8 graphs.

    flops = int(2 * T * N * F * H            # X @ W_gcn
                + 2 * T * N * N * H          # A_hat @ XW
                + 2 * T * N * H * 4 * H      # gcn_out @ W_ih
                + 2 * T * N * H * 4 * H      # h @ W_hh (recurrence)
                + 10 * T * N * H)            # elementwise gate math
    transcendentals = int(T * (2 * N * 4 * H + N * H))
    bytes_accessed = int(4 * (a_hat.size + x.size
                              + params["w_gcn"].size + params["b_gcn"].size
                              + params["w_ih"].size + params["w_hh"].size
                              + params["b_lstm"].size + T * N * H))

    return pl.pallas_call(
        _fused_cd_gcn_kernel,
        out_shape=jax.ShapeDtypeStruct((T, N, H), jnp.float32),
        grid_spec=pltpu.PrefetchScalarGridSpec(
            num_scalar_prefetch=0,
            grid=(1,),                                          # whole problem in VMEM
            in_specs=[
                pl.BlockSpec((T, N, N), lambda i: (0, 0, 0)),   # A_hat
                pl.BlockSpec((T, N, F), lambda i: (0, 0, 0)),   # X
                pl.BlockSpec((F, H), lambda i: (0, 0)),         # W_gcn
                pl.BlockSpec((1, H), lambda i: (0, 0)),         # b_gcn
                pl.BlockSpec((H, 4 * H), lambda i: (0, 0)),     # W_ih^T
                pl.BlockSpec((H, 4 * H), lambda i: (0, 0)),     # W_hh^T
                pl.BlockSpec((1, 4 * H), lambda i: (0, 0)),     # b_ih + b_hh
            ],
            out_specs=pl.BlockSpec((T, N, H), lambda i: (0, 0, 0)),
            scratch_shapes=[pltpu.VMEM((T, N, 4 * H), jnp.float32)],  # gates_x
        ),
        # NOTE: the LSTM recurrence lives inside the single grid step — this axis
        # must NOT be sharded across cores; keep it "arbitrary".
        compiler_params=pltpu.CompilerParams(dimension_semantics=("arbitrary",)),
        cost_estimate=pl.CostEstimate(flops=flops,
                                      transcendentals=transcendentals,
                                      bytes_accessed=bytes_accessed),
    )(a_hat, x, params["w_gcn"], params["b_gcn"],
      params["w_ih"], params["w_hh"], params["b_lstm"])


# -----------------------------------------------------------------------------
# Glue: dense normalized adjacency matching PyG GCNConv's gcn_norm:
#   add remaining self loops, duplicate edges accumulate (scatter-add),
#   no symmetrization, D^{-1/2} A D^{-1/2} with degree from incoming edges.
# -----------------------------------------------------------------------------
def normalized_adj(edge_index, num_nodes):
    src, dst = edge_index                       # messages flow src -> dst
    a = jnp.zeros((num_nodes, num_nodes), jnp.float32).at[dst, src].add(1.0)
    idx = jnp.arange(num_nodes)
    a = a.at[idx, idx].max(1.0)                 # add_remaining_self_loops
    deg = a.sum(axis=1)
    d_inv_sqrt = jnp.where(deg > 0, jax.lax.rsqrt(deg), 0.0)
    return d_inv_sqrt[:, None] * a * d_inv_sqrt[None, :]


# -----------------------------------------------------------------------------
# Pure-JAX reference for sanity checking.
# -----------------------------------------------------------------------------
def reference_forward(a_hat, x, params):
    h = jnp.einsum("tnm,tmf,fh->tnh", a_hat, x, params["w_gcn"]) + params["b_gcn"]
    h = jnp.maximum(h, 0.0)
    T, N, H = h.shape
    hs = jnp.zeros((N, H), jnp.float32)
    cs = jnp.zeros((N, H), jnp.float32)
    outs = []
    for t in range(T):
        gates = h[t] @ params["w_ih"] + hs @ params["w_hh"] + params["b_lstm"]
        i = jax.nn.sigmoid(gates[:, 0 * H:1 * H])
        f = jax.nn.sigmoid(gates[:, 1 * H:2 * H])
        g = jnp.tanh(gates[:, 2 * H:3 * H])
        o = jax.nn.sigmoid(gates[:, 3 * H:4 * H])
        cs = f * cs + i * g
        hs = o * jnp.tanh(cs)
        outs.append(hs)
    return jnp.stack(outs, 0)


if __name__ == "__main__":
    T, N, F, H = 6, 8, 16, 32   # seq_len, nodes, input_dim, hidden_dim
    key = jax.random.PRNGKey(0)
    kx, ke, k1, k2, k3, k4, k5, k6 = jax.random.split(key, 8)

    # temporal graph snapshots: node features + random edge lists
    x = jax.random.normal(kx, (T, N, F), jnp.float32)
    edges = jax.random.randint(ke, (T, 2, 12), 0, N)
    a_hat = jnp.stack([normalized_adj(edges[t], N) for t in range(T)], 0)

    scale = 0.1
    params = {
        "w_gcn": scale * jax.random.normal(k1, (F, H), jnp.float32),
        "b_gcn": scale * jax.random.normal(k2, (1, H), jnp.float32),
        "w_ih": scale * jax.random.normal(k3, (H, 4 * H), jnp.float32),   # W_ih^T
        "w_hh": scale * jax.random.normal(k4, (H, 4 * H), jnp.float32),   # W_hh^T
        "b_lstm": scale * (jax.random.normal(k5, (1, 4 * H), jnp.float32)
                           + jax.random.normal(k6, (1, 4 * H), jnp.float32)),  # b_ih+b_hh
    }

    out = jax.block_until_ready(cd_gcn_forward(a_hat, x, params))
    ref = reference_forward(a_hat, x, params)

    assert out.shape == (T, N, H), out.shape
    assert jnp.allclose(out, ref, atol=1e-4, rtol=1e-4), float(jnp.abs(out - ref).max())
    print("KERNEL_OK")
</pallas_src>

<mosaic_0001>
module attributes {stable_mosaic.version = 11 : i64} {
  func.func @_fused_cd_gcn_kernel(%arg0: i32, %arg1: memref<6x8x8xf32, #tpu.memory_space<vmem>>, %arg2: memref<6x8x16xf32, #tpu.memory_space<vmem>>, %arg3: memref<16x32xf32, #tpu.memory_space<vmem>>, %arg4: memref<1x32xf32, #tpu.memory_space<vmem>>, %arg5: memref<32x128xf32, #tpu.memory_space<vmem>>, %arg6: memref<32x128xf32, #tpu.memory_space<vmem>>, %arg7: memref<1x128xf32, #tpu.memory_space<vmem>>, %arg8: memref<6x8x32xf32, #tpu.memory_space<vmem>>, %arg9: memref<6x8x128xf32, #tpu.memory_space<vmem>>) attributes {dimension_semantics = [#tpu.dimension_semantics<arbitrary>], iteration_bounds = array<i64: 1>, scalar_prefetch = 0 : i64, scratch_operands = 1 : i64, tpu.core_type = #tpu.core_type<tc>, window_params = [{pipeline_mode = #tpu.pipeline_mode<synchronous>, transform_indices = @transform_0, window_bounds = array<i64: 6, 8, 8>}, {pipeline_mode = #tpu.pipeline_mode<synchronous>, transform_indices = @transform_1, window_bounds = array<i64: 6, 8, 16>}, {pipeline_mode = #tpu.pipeline_mode<synchronous>, transform_indices = @transform_2, window_bounds = array<i64: 16, 32>}, {pipeline_mode = #tpu.pipeline_mode<synchronous>, transform_indices = @transform_3, window_bounds = array<i64: 1, 32>}, {pipeline_mode = #tpu.pipeline_mode<synchronous>, transform_indices = @transform_4, window_bounds = array<i64: 32, 128>}, {pipeline_mode = #tpu.pipeline_mode<synchronous>, transform_indices = @transform_5, window_bounds = array<i64: 32, 128>}, {pipeline_mode = #tpu.pipeline_mode<synchronous>, transform_indices = @transform_6, window_bounds = array<i64: 1, 128>}, {pipeline_mode = #tpu.pipeline_mode<synchronous>, transform_indices = @transform_7, window_bounds = array<i64: 6, 8, 32>}]} {
    %c0 = arith.constant 0 : index
    %c0_0 = arith.constant 0 : index
    %c0_1 = arith.constant 0 : index
    %0 = vector.load %arg2[%c0, %c0_0, %c0_1] : memref<6x8x16xf32, #tpu.memory_space<vmem>>, vector<6x8x16xf32>
    %1 = vector.shape_cast %0 : vector<6x8x16xf32> to vector<48x16xf32>
    %c0_2 = arith.constant 0 : index
    %c0_3 = arith.constant 0 : index
    %2 = vector.load %arg3[%c0_2, %c0_3] : memref<16x32xf32, #tpu.memory_space<vmem>>, vector<16x32xf32>
    %cst = arith.constant dense<0.000000e+00> : vector<48x32xf32>
    %3 = tpu.matmul %1, %2, %cst {dimension_numbers = #tpu.dot_dimension_numbers<[1], [0], [0], [1], [0, 0, 1, 1], [], []>} : vector<48x16xf32>, vector<16x32xf32>, vector<48x32xf32> -> vector<48x32xf32>
    %c0_4 = arith.constant 0 : index
    %c0_5 = arith.constant 0 : index
    %c0_6 = arith.constant 0 : index
    %4 = vector.load %arg1[%c0_4, %c0_5, %c0_6] : memref<6x8x8xf32, #tpu.memory_space<vmem>>, vector<6x8x8xf32>
    %5 = vector.shape_cast %3 : vector<48x32xf32> to vector<6x8x32xf32>
    "tpu.trace_start"() <{level = 10 : i32, message = "tnm,tmh->tnh"}> : () -> ()
    %cst_7 = arith.constant dense<0.000000e+00> : vector<6x8x32xf32>
    %6 = tpu.matmul %4, %5, %cst_7 {dimension_numbers = #tpu.dot_dimension_numbers<[2], [1], [1], [2], [0, 0, 0, 1, 1, 2], [0], [0]>} : vector<6x8x8xf32>, vector<6x8x32xf32>, vector<6x8x32xf32> -> vector<6x8x32xf32>
    "tpu.trace_stop"() : () -> ()
    %7 = vector.shape_cast %6 : vector<6x8x32xf32> to vector<48x32xf32>
    %c0_8 = arith.constant 0 : index
    %c0_9 = arith.constant 0 : index
    %8 = vector.load %arg4[%c0_8, %c0_9] : memref<1x32xf32, #tpu.memory_space<vmem>>, vector<1x32xf32>
    %9 = vector.broadcast %8 : vector<1x32xf32> to vector<48x32xf32>
    %10 = arith.addf %7, %9 : vector<48x32xf32>
    %cst_10 = arith.constant 0.000000e+00 : f32
    %11 = vector.broadcast %cst_10 : f32 to vector<48x32xf32>
    %12 = arith.maximumf %10, %11 : vector<48x32xf32>
    %c0_11 = arith.constant 0 : index
    %c0_12 = arith.constant 0 : index
    %13 = vector.load %arg5[%c0_11, %c0_12] : memref<32x128xf32, #tpu.memory_space<vmem>>, vector<32x128xf32>
    %cst_13 = arith.constant dense<0.000000e+00> : vector<48x128xf32>
    %14 = tpu.matmul %12, %13, %cst_13 {dimension_numbers = #tpu.dot_dimension_numbers<[1], [0], [0], [1], [0, 0, 1, 1], [], []>} : vector<48x32xf32>, vector<32x128xf32>, vector<48x128xf32> -> vector<48x128xf32>
    %c0_14 = arith.constant 0 : index
    %c0_15 = arith.constant 0 : index
    %15 = vector.load %arg7[%c0_14, %c0_15] : memref<1x128xf32, #tpu.memory_space<vmem>>, vector<1x128xf32>
    %16 = vector.broadcast %15 : vector<1x128xf32> to vector<48x128xf32>
    %17 = arith.addf %14, %16 : vector<48x128xf32>
    %18 = vector.shape_cast %17 : vector<48x128xf32> to vector<6x8x128xf32>
    %c0_16 = arith.constant 0 : index
    %c0_17 = arith.constant 0 : index
    %c0_18 = arith.constant 0 : index
    %19 = vector.load %arg9[%c0_16, %c0_17, %c0_18] : memref<6x8x128xf32, #tpu.memory_space<vmem>>, vector<6x8x128xf32>
    tpu.vector_store %arg9[%c0_16, %c0_17, %c0_18], %18 {strides = array<i32>} : memref<6x8x128xf32, #tpu.memory_space<vmem>>, vector<6x8x128xf32>,
    %20 = tpu.iota {dimensions = array<i32: 1>} : vector<8x128xi32>
    %c64_i32 = arith.constant 64 : i32
    %21 = vector.broadcast %c64_i32 : i32 to vector<8x128xi32>
    %22 = arith.cmpi sge, %20, %21 : vector<8x128xi32>
    %c96_i32 = arith.constant 96 : i32
    %23 = vector.broadcast %c96_i32 : i32 to vector<8x128xi32>
    %24 = arith.cmpi slt, %20, %23 : vector<8x128xi32>
    %25 = arith.andi %22, %24 : vector<8x128xi1>
    %cst_19 = arith.constant 0.000000e+00 : f32
    %26 = vector.broadcast %cst_19 : f32 to vector<8x32xf32>
    %cst_20 = arith.constant 0.000000e+00 : f32
    %27 = vector.broadcast %cst_20 : f32 to vector<8x32xf32>
    %c0_i32 = arith.constant 0 : i32
    %28 = arith.index_cast %c0_i32 : i32 to index
    %c0_21 = arith.constant 0 : index
    %c0_22 = arith.constant 0 : index
    %29 = vector.load %arg9[%28, %c0_21, %c0_22] : memref<6x8x128xf32, #tpu.memory_space<vmem>>, vector<1x8x128xf32>
    %30 = vector.shape_cast %29 : vector<1x8x128xf32> to vector<8x128xf32>
    %c0_23 = arith.constant 0 : index
    %c0_24 = arith.constant 0 : index
    %31 = vector.load %arg6[%c0_23, %c0_24] : memref<32x128xf32, #tpu.memory_space<vmem>>, vector<32x128xf32>
    %cst_25 = arith.constant dense<0.000000e+00> : vector<8x128xf32>
    %32 = tpu.matmul %26, %31, %cst_25 {dimension_numbers = #tpu.dot_dimension_numbers<[1], [0], [0], [1], [0, 0, 1, 1], [], []>} : vector<8x32xf32>, vector<32x128xf32>, vector<8x128xf32> -> vector<8x128xf32>
    %33 = arith.addf %30, %32 : vector<8x128xf32>
    %34 = math.tanh %33 : vector<8x128xf32>
    %35 = arith.negf %33 : vector<8x128xf32>
    %36 = math.exp %35 : vector<8x128xf32>
    %cst_26 = arith.constant 1.000000e+00 : f32
    %37 = vector.broadcast %cst_26 : f32 to vector<8x128xf32>
    %38 = arith.addf %37, %36 : vector<8x128xf32>
    %39 = arith.divf %37, %38 : vector<8x128xf32>
    %40 = arith.select %25, %34, %39 : vector<8x128xi1>, vector<8x128xf32>
    %41 = vector.extract_strided_slice %40 {offsets = [0, 0], sizes = [8, 32], strides = [1, 1]} : vector<8x128xf32> to vector<8x32xf32>
    %42 = vector.extract_strided_slice %40 {offsets = [0, 32], sizes = [8, 32], strides = [1, 1]} : vector<8x128xf32> to vector<8x32xf32>
    %43 = vector.extract_strided_slice %40 {offsets = [0, 64], sizes = [8, 32], strides = [1, 1]} : vector<8x128xf32> to vector<8x32xf32>
    %44 = vector.extract_strided_slice %40 {offsets = [0, 96], sizes = [8, 32], strides = [1, 1]} : vector<8x128xf32> to vector<8x32xf32>
    %45 = arith.mulf %42, %27 : vector<8x32xf32>
    %46 = arith.mulf %41, %43 : vector<8x32xf32>
    %47 = arith.addf %45, %46 : vector<8x32xf32>
    %48 = math.tanh %47 : vector<8x32xf32>
    %49 = arith.mulf %44, %48 : vector<8x32xf32>
    %50 = arith.index_cast %c0_i32 : i32 to index
    %c0_27 = arith.constant 0 : index
    %c0_28 = arith.constant 0 : index
    %51 = vector.load %arg8[%50, %c0_27, %c0_28] : memref<6x8x32xf32, #tpu.memory_space<vmem>>, vector<1x8x32xf32>
    %52 = vector.shape_cast %51 : vector<1x8x32xf32> to vector<8x32xf32>
    %53 = vector.shape_cast %49 : vector<8x32xf32> to vector<1x8x32xf32>
    tpu.vector_store %arg8[%50, %c0_27, %c0_28], %53 {strides = array<i32>} : memref<6x8x32xf32, #tpu.memory_space<vmem>>, vector<1x8x32xf32>,
    %c1_i32 = arith.constant 1 : i32
    %54 = arith.index_cast %c1_i32 : i32 to index
    %c0_29 = arith.constant 0 : index
    %c0_30 = arith.constant 0 : index
    %55 = vector.load %arg9[%54, %c0_29, %c0_30] : memref<6x8x128xf32, #tpu.memory_space<vmem>>, vector<1x8x128xf32>
    %56 = vector.shape_cast %55 : vector<1x8x128xf32> to vector<8x128xf32>
    %c0_31 = arith.constant 0 : index
    %c0_32 = arith.constant 0 : index
    %57 = vector.load %arg6[%c0_31, %c0_32] : memref<32x128xf32, #tpu.memory_space<vmem>>, vector<32x128xf32>
    %cst_33 = arith.constant dense<0.000000e+00> : vector<8x128xf32>
    %58 = tpu.matmul %49, %57, %cst_33 {dimension_numbers = #tpu.dot_dimension_numbers<[1], [0], [0], [1], [0, 0, 1, 1], [], []>} : vector<8x32xf32>, vector<32x128xf32>, vector<8x128xf32> -> vector<8x128xf32>
    %59 = arith.addf %56, %58 : vector<8x128xf32>
    %60 = math.tanh %59 : vector<8x128xf32>
    %61 = arith.negf %59 : vector<8x128xf32>
    %62 = math.exp %61 : vector<8x128xf32>
    %cst_34 = arith.constant 1.000000e+00 : f32
    %63 = vector.broadcast %cst_34 : f32 to vector<8x128xf32>
    %64 = arith.addf %63, %62 : vector<8x128xf32>
    %65 = arith.divf %63, %64 : vector<8x128xf32>
    %66 = arith.select %25, %60, %65 : vector<8x128xi1>, vector<8x128xf32>
    %67 = vector.extract_strided_slice %66 {offsets = [0, 0], sizes = [8, 32], strides = [1, 1]} : vector<8x128xf32> to vector<8x32xf32>
    %68 = vector.extract_strided_slice %66 {offsets = [0, 32], sizes = [8, 32], strides = [1, 1]} : vector<8x128xf32> to vector<8x32xf32>
    %69 = vector.extract_strided_slice %66 {offsets = [0, 64], sizes = [8, 32], strides = [1, 1]} : vector<8x128xf32> to vector<8x32xf32>
    %70 = vector.extract_strided_slice %66 {offsets = [0, 96], sizes = [8, 32], strides = [1, 1]} : vector<8x128xf32> to vector<8x32xf32>
    %71 = arith.mulf %68, %47 : vector<8x32xf32>
    %72 = arith.mulf %67, %69 : vector<8x32xf32>
    %73 = arith.addf %71, %72 : vector<8x32xf32>
    %74 = math.tanh %73 : vector<8x32xf32>
    %75 = arith.mulf %70, %74 : vector<8x32xf32>
    %76 = arith.index_cast %c1_i32 : i32 to index
    %c0_35 = arith.constant 0 : index
    %c0_36 = arith.constant 0 : index
    %77 = vector.load %arg8[%76, %c0_35, %c0_36] : memref<6x8x32xf32, #tpu.memory_space<vmem>>, vector<1x8x32xf32>
    %78 = vector.shape_cast %77 : vector<1x8x32xf32> to vector<8x32xf32>
    %79 = vector.shape_cast %75 : vector<8x32xf32> to vector<1x8x32xf32>
    tpu.vector_store %arg8[%76, %c0_35, %c0_36], %79 {strides = array<i32>} : memref<6x8x32xf32, #tpu.memory_space<vmem>>, vector<1x8x32xf32>,
    %c2_i32 = arith.constant 2 : i32
    %80 = arith.index_cast %c2_i32 : i32 to index
    %c0_37 = arith.constant 0 : index
    %c0_38 = arith.constant 0 : index
    %81 = vector.load %arg9[%80, %c0_37, %c0_38] : memref<6x8x128xf32, #tpu.memory_space<vmem>>, vector<1x8x128xf32>
    %82 = vector.shape_cast %81 : vector<1x8x128xf32> to vector<8x128xf32>
    %c0_39 = arith.constant 0 : index
    %c0_40 = arith.constant 0 : index
    %83 = vector.load %arg6[%c0_39, %c0_40] : memref<32x128xf32, #tpu.memory_space<vmem>>, vector<32x128xf32>
    %cst_41 = arith.constant dense<0.000000e+00> : vector<8x128xf32>
    %84 = tpu.matmul %75, %83, %cst_41 {dimension_numbers = #tpu.dot_dimension_numbers<[1], [0], [0], [1], [0, 0, 1, 1], [], []>} : vector<8x32xf32>, vector<32x128xf32>, vector<8x128xf32> -> vector<8x128xf32>
    %85 = arith.addf %82, %84 : vector<8x128xf32>
    %86 = math.tanh %85 : vector<8x128xf32>
    %87 = arith.negf %85 : vector<8x128xf32>
    %88 = math.exp %87 : vector<8x128xf32>
    %cst_42 = arith.constant 1.000000e+00 : f32
    %89 = vector.broadcast %cst_42 : f32 to vector<8x128xf32>
    %90 = arith.addf %89, %88 : vector<8x128xf32>
    %91 = arith.divf %89, %90 : vector<8x128xf32>
    %92 = arith.select %25, %86, %91 : vector<8x128xi1>, vector<8x128xf32>
    %93 = vector.extract_strided_slice %92 {offsets = [0, 0], sizes = [8, 32], strides = [1, 1]} : vector<8x128xf32> to vector<8x32xf32>
    %94 = vector.extract_strided_slice %92 {offsets = [0, 32], sizes = [8, 32], strides = [1, 1]} : vector<8x128xf32> to vector<8x32xf32>
    %95 = vector.extract_strided_slice %92 {offsets = [0, 64], sizes = [8, 32], strides = [1, 1]} : vector<8x128xf32> to vector<8x32xf32>
    %96 = vector.extract_strided_slice %92 {offsets = [0, 96], sizes = [8, 32], strides = [1, 1]} : vector<8x128xf32> to vector<8x32xf32>
    %97 = arith.mulf %94, %73 : vector<8x32xf32>
    %98 = arith.mulf %93, %95 : vector<8x32xf32>
    %99 = arith.addf %97, %98 : vector<8x32xf32>
    %100 = math.tanh %99 : vector<8x32xf32>
    %101 = arith.mulf %96, %100 : vector<8x32xf32>
    %102 = arith.index_cast %c2_i32 : i32 to index
    %c0_43 = arith.constant 0 : index
    %c0_44 = arith.constant 0 : index
    %103 = vector.load %arg8[%102, %c0_43, %c0_44] : memref<6x8x32xf32, #tpu.memory_space<vmem>>, vector<1x8x32xf32>
    %104 = vector.shape_cast %103 : vector<1x8x32xf32> to vector<8x32xf32>
    %105 = vector.shape_cast %101 : vector<8x32xf32> to vector<1x8x32xf32>
    tpu.vector_store %arg8[%102, %c0_43, %c0_44], %105 {strides = array<i32>} : memref<6x8x32xf32, #tpu.memory_space<vmem>>, vector<1x8x32xf32>,
    %c3_i32 = arith.constant 3 : i32
    %106 = arith.index_cast %c3_i32 : i32 to index
    %c0_45 = arith.constant 0 : index
    %c0_46 = arith.constant 0 : index
    %107 = vector.load %arg9[%106, %c0_45, %c0_46] : memref<6x8x128xf32, #tpu.memory_space<vmem>>, vector<1x8x128xf32>
    %108 = vector.shape_cast %107 : vector<1x8x128xf32> to vector<8x128xf32>
    %c0_47 = arith.constant 0 : index
    %c0_48 = arith.constant 0 : index
    %109 = vector.load %arg6[%c0_47, %c0_48] : memref<32x128xf32, #tpu.memory_space<vmem>>, vector<32x128xf32>
    %cst_49 = arith.constant dense<0.000000e+00> : vector<8x128xf32>
    %110 = tpu.matmul %101, %109, %cst_49 {dimension_numbers = #tpu.dot_dimension_numbers<[1], [0], [0], [1], [0, 0, 1, 1], [], []>} : vector<8x32xf32>, vector<32x128xf32>, vector<8x128xf32> -> vector<8x128xf32>
    %111 = arith.addf %108, %110 : vector<8x128xf32>
    %112 = math.tanh %111 : vector<8x128xf32>
    %113 = arith.negf %111 : vector<8x128xf32>
    %114 = math.exp %113 : vector<8x128xf32>
    %cst_50 = arith.constant 1.000000e+00 : f32
    %115 = vector.broadcast %cst_50 : f32 to vector<8x128xf32>
    %116 = arith.addf %115, %114 : vector<8x128xf32>
    %117 = arith.divf %115, %116 : vector<8x128xf32>
    %118 = arith.select %25, %112, %117 : vector<8x128xi1>, vector<8x128xf32>
    %119 = vector.extract_strided_slice %118 {offsets = [0, 0], sizes = [8, 32], strides = [1, 1]} : vector<8x128xf32> to vector<8x32xf32>
    %120 = vector.extract_strided_slice %118 {offsets = [0, 32], sizes = [8, 32], strides = [1, 1]} : vector<8x128xf32> to vector<8x32xf32>
    %121 = vector.extract_strided_slice %118 {offsets = [0, 64], sizes = [8, 32], strides = [1, 1]} : vector<8x128xf32> to vector<8x32xf32>
    %122 = vector.extract_strided_slice %118 {offsets = [0, 96], sizes = [8, 32], strides = [1, 1]} : vector<8x128xf32> to vector<8x32xf32>
    %123 = arith.mulf %120, %99 : vector<8x32xf32>
    %124 = arith.mulf %119, %121 : vector<8x32xf32>
    %125 = arith.addf %123, %124 : vector<8x32xf32>
    %126 = math.tanh %125 : vector<8x32xf32>
    %127 = arith.mulf %122, %126 : vector<8x32xf32>
    %128 = arith.index_cast %c3_i32 : i32 to index
    %c0_51 = arith.constant 0 : index
    %c0_52 = arith.constant 0 : index
    %129 = vector.load %arg8[%128, %c0_51, %c0_52] : memref<6x8x32xf32, #tpu.memory_space<vmem>>, vector<1x8x32xf32>
    %130 = vector.shape_cast %129 : vector<1x8x32xf32> to vector<8x32xf32>
    %131 = vector.shape_cast %127 : vector<8x32xf32> to vector<1x8x32xf32>
    tpu.vector_store %arg8[%128, %c0_51, %c0_52], %131 {strides = array<i32>} : memref<6x8x32xf32, #tpu.memory_space<vmem>>, vector<1x8x32xf32>,
    %c4_i32 = arith.constant 4 : i32
    %132 = arith.index_cast %c4_i32 : i32 to index
    %c0_53 = arith.constant 0 : index
    %c0_54 = arith.constant 0 : index
    %133 = vector.load %arg9[%132, %c0_53, %c0_54] : memref<6x8x128xf32, #tpu.memory_space<vmem>>, vector<1x8x128xf32>
    %134 = vector.shape_cast %133 : vector<1x8x128xf32> to vector<8x128xf32>
    %c0_55 = arith.constant 0 : index
    %c0_56 = arith.constant 0 : index
    %135 = vector.load %arg6[%c0_55, %c0_56] : memref<32x128xf32, #tpu.memory_space<vmem>>, vector<32x128xf32>
    %cst_57 = arith.constant dense<0.000000e+00> : vector<8x128xf32>
    %136 = tpu.matmul %127, %135, %cst_57 {dimension_numbers = #tpu.dot_dimension_numbers<[1], [0], [0], [1], [0, 0, 1, 1], [], []>} : vector<8x32xf32>, vector<32x128xf32>, vector<8x128xf32> -> vector<8x128xf32>
    %137 = arith.addf %134, %136 : vector<8x128xf32>
    %138 = math.tanh %137 : vector<8x128xf32>
    %139 = arith.negf %137 : vector<8x128xf32>
    %140 = math.exp %139 : vector<8x128xf32>
    %cst_58 = arith.constant 1.000000e+00 : f32
    %141 = vector.broadcast %cst_58 : f32 to vector<8x128xf32>
    %142 = arith.addf %141, %140 : vector<8x128xf32>
    %143 = arith.divf %141, %142 : vector<8x128xf32>
    %144 = arith.select %25, %138, %143 : vector<8x128xi1>, vector<8x128xf32>
    %145 = vector.extract_strided_slice %144 {offsets = [0, 0], sizes = [8, 32], strides = [1, 1]} : vector<8x128xf32> to vector<8x32xf32>
    %146 = vector.extract_strided_slice %144 {offsets = [0, 32], sizes = [8, 32], strides = [1, 1]} : vector<8x128xf32> to vector<8x32xf32>
    %147 = vector.extract_strided_slice %144 {offsets = [0, 64], sizes = [8, 32], strides = [1, 1]} : vector<8x128xf32> to vector<8x32xf32>
    %148 = vector.extract_strided_slice %144 {offsets = [0, 96], sizes = [8, 32], strides = [1, 1]} : vector<8x128xf32> to vector<8x32xf32>
    %149 = arith.mulf %146, %125 : vector<8x32xf32>
    %150 = arith.mulf %145, %147 : vector<8x32xf32>
    %151 = arith.addf %149, %150 : vector<8x32xf32>
    %152 = math.tanh %151 : vector<8x32xf32>
    %153 = arith.mulf %148, %152 : vector<8x32xf32>
    %154 = arith.index_cast %c4_i32 : i32 to index
    %c0_59 = arith.constant 0 : index
    %c0_60 = arith.constant 0 : index
    %155 = vector.load %arg8[%154, %c0_59, %c0_60] : memref<6x8x32xf32, #tpu.memory_space<vmem>>, vector<1x8x32xf32>
    %156 = vector.shape_cast %155 : vector<1x8x32xf32> to vector<8x32xf32>
    %157 = vector.shape_cast %153 : vector<8x32xf32> to vector<1x8x32xf32>
    tpu.vector_store %arg8[%154, %c0_59, %c0_60], %157 {strides = array<i32>} : memref<6x8x32xf32, #tpu.memory_space<vmem>>, vector<1x8x32xf32>,
    %c5_i32 = arith.constant 5 : i32
    %158 = arith.index_cast %c5_i32 : i32 to index
    %c0_61 = arith.constant 0 : index
    %c0_62 = arith.constant 0 : index
    %159 = vector.load %arg9[%158, %c0_61, %c0_62] : memref<6x8x128xf32, #tpu.memory_space<vmem>>, vector<1x8x128xf32>
    %160 = vector.shape_cast %159 : vector<1x8x128xf32> to vector<8x128xf32>
    %c0_63 = arith.constant 0 : index
    %c0_64 = arith.constant 0 : index
    %161 = vector.load %arg6[%c0_63, %c0_64] : memref<32x128xf32, #tpu.memory_space<vmem>>, vector<32x128xf32>
    %cst_65 = arith.constant dense<0.000000e+00> : vector<8x128xf32>
    %162 = tpu.matmul %153, %161, %cst_65 {dimension_numbers = #tpu.dot_dimension_numbers<[1], [0], [0], [1], [0, 0, 1, 1], [], []>} : vector<8x32xf32>, vector<32x128xf32>, vector<8x128xf32> -> vector<8x128xf32>
    %163 = arith.addf %160, %162 : vector<8x128xf32>
    %164 = math.tanh %163 : vector<8x128xf32>
    %165 = arith.negf %163 : vector<8x128xf32>
    %166 = math.exp %165 : vector<8x128xf32>
    %cst_66 = arith.constant 1.000000e+00 : f32
    %167 = vector.broadcast %cst_66 : f32 to vector<8x128xf32>
    %168 = arith.addf %167, %166 : vector<8x128xf32>
    %169 = arith.divf %167, %168 : vector<8x128xf32>
    %170 = arith.select %25, %164, %169 : vector<8x128xi1>, vector<8x128xf32>
    %171 = vector.extract_strided_slice %170 {offsets = [0, 0], sizes = [8, 32], strides = [1, 1]} : vector<8x128xf32> to vector<8x32xf32>
    %172 = vector.extract_strided_slice %170 {offsets = [0, 32], sizes = [8, 32], strides = [1, 1]} : vector<8x128xf32> to vector<8x32xf32>
    %173 = vector.extract_strided_slice %170 {offsets = [0, 64], sizes = [8, 32], strides = [1, 1]} : vector<8x128xf32> to vector<8x32xf32>
    %174 = vector.extract_strided_slice %170 {offsets = [0, 96], sizes = [8, 32], strides = [1, 1]} : vector<8x128xf32> to vector<8x32xf32>
    %175 = arith.mulf %172, %151 : vector<8x32xf32>
    %176 = arith.mulf %171, %173 : vector<8x32xf32>
    %177 = arith.addf %175, %176 : vector<8x32xf32>
    %178 = math.tanh %177 : vector<8x32xf32>
    %179 = arith.mulf %174, %178 : vector<8x32xf32>
    %180 = arith.index_cast %c5_i32 : i32 to index
    %c0_67 = arith.constant 0 : index
    %c0_68 = arith.constant 0 : index
    %181 = vector.load %arg8[%180, %c0_67, %c0_68] : memref<6x8x32xf32, #tpu.memory_space<vmem>>, vector<1x8x32xf32>
    %182 = vector.shape_cast %181 : vector<1x8x32xf32> to vector<8x32xf32>
    %183 = vector.shape_cast %179 : vector<8x32xf32> to vector<1x8x32xf32>
    tpu.vector_store %arg8[%180, %c0_67, %c0_68], %183 {strides = array<i32>} : memref<6x8x32xf32, #tpu.memory_space<vmem>>, vector<1x8x32xf32>,
    %c6_i32 = arith.constant 6 : i32
    return
  }
  func.func @transform_0(%arg0: i32) -> (i32, i32, i32) {
    %c0_i32 = arith.constant 0 : i32
    %c0_i32_0 = arith.constant 0 : i32
    %c0_i32_1 = arith.constant 0 : i32
    %c0_i32_2 = arith.constant 0 : i32
    return %c0_i32, %c0_i32_0, %c0_i32_1 : i32, i32, i32
  }
  func.func @transform_1(%arg0: i32) -> (i32, i32, i32) {
    %c0_i32 = arith.constant 0 : i32
    %c0_i32_0 = arith.constant 0 : i32
    %c0_i32_1 = arith.constant 0 : i32
    %c0_i32_2 = arith.constant 0 : i32
    return %c0_i32, %c0_i32_0, %c0_i32_1 : i32, i32, i32
  }
  func.func @transform_2(%arg0: i32) -> (i32, i32) {
    %c0_i32 = arith.constant 0 : i32
    %c0_i32_0 = arith.constant 0 : i32
    %c0_i32_1 = arith.constant 0 : i32
    return %c0_i32, %c0_i32_0 : i32, i32
  }
  func.func @transform_3(%arg0: i32) -> (i32, i32) {
    %c0_i32 = arith.constant 0 : i32
    %c0_i32_0 = arith.constant 0 : i32
    %c0_i32_1 = arith.constant 0 : i32
    return %c0_i32, %c0_i32_0 : i32, i32
  }
  func.func @transform_4(%arg0: i32) -> (i32, i32) {
    %c0_i32 = arith.constant 0 : i32
    %c0_i32_0 = arith.constant 0 : i32
    %c0_i32_1 = arith.constant 0 : i32
    return %c0_i32, %c0_i32_0 : i32, i32
  }
  func.func @transform_5(%arg0: i32) -> (i32, i32) {
    %c0_i32 = arith.constant 0 : i32
    %c0_i32_0 = arith.constant 0 : i32
    %c0_i32_1 = arith.constant 0 : i32
    return %c0_i32, %c0_i32_0 : i32, i32
  }
  func.func @transform_6(%arg0: i32) -> (i32, i32) {
    %c0_i32 = arith.constant 0 : i32
    %c0_i32_0 = arith.constant 0 : i32
    %c0_i32_1 = arith.constant 0 : i32
    return %c0_i32, %c0_i32_0 : i32, i32
  }
  func.func @transform_7(%arg0: i32) -> (i32, i32, i32) {
    %c0_i32 = arith.constant 0 : i32
    %c0_i32_0 = arith.constant 0 : i32
    %c0_i32_1 = arith.constant 0 : i32
    %c0_i32_2 = arith.constant 0 : i32
    return %c0_i32, %c0_i32_0, %c0_i32_1 : i32, i32, i32
  }
}

</mosaic_0001>

<llo_original>
// kernel: tpu_custom_call.1
$region0: #{tpu_custom_call.1}
  #allocation0 [shape = 'u32[]', space=smem, size = 0x4, offset = 0x4, fixed_abs, tag = 'smem constant byte address 0x4 - core index']
  #allocation1 [shape = 'u32[72,128]{1,0:T(1,128)}', space=vmem, size = 0x9000, scoped, tag = 'internal scratch']
  #allocation2 [shape = 'f32[6,8,128]{2,1,0:T(8,128)}', space=vmem, size = 0x6000, scoped, tag = 'scratch operand']
  %s0 = inlined_call_operand.hbm [shape: f32[6,8,8], index: 0, kind: input, shape index: {}]
  %s1 = inlined_call_operand.hbm [shape: f32[6,8,16], index: 1, kind: input, shape index: {}]
  %s2 = inlined_call_operand.hbm [shape: f32[16,32], index: 2, kind: input, shape index: {}]
  %s3 = inlined_call_operand.vmem [shape: f32[1,32], index: 3, kind: input, shape index: {}]
  %s4 = inlined_call_operand.hbm [shape: f32[32,128], index: 4, kind: input, shape index: {}]
  %s5 = inlined_call_operand.hbm [shape: f32[32,128], index: 5, kind: input, shape index: {}]
  %s6 = inlined_call_operand.vmem [shape: f32[1,128], index: 6, kind: input, shape index: {}]
  %s7 = inlined_call_operand.hbm [shape: f32[6,8,32], index: 7, kind: output, shape index: {}]
  %s8 = sld [smem:[#allocation0]]
  $region58: #{tpu_custom_call.1} parent=0
    _
  %s10 = ssub.s32 1, %s8
  %s11 = scalar_select 0, %s10, %s8
  $region1: #{tpu_custom_call.1} parent=0
    #allocation3 [shape = 'u8[24576]{0}', space=vmem, size = 0x6000, scoped, tag = 'input window, operand 0, single buffered']
    #allocation4 [shape = 's32[1]{0}', space=sflag, size = 0x4, scoped, tag = 'scoped memory for tpu_custom_call.1']
    #allocation5 [shape = 's32[1]{0}', space=sflag, size = 0x4, scoped, tag = 'scoped memory for tpu_custom_call.1']
    #allocation6 [shape = 'u8[24576]{0}', space=vmem, size = 0x6000, scoped, tag = 'input window, operand 1, single buffered']
    #allocation7 [shape = 's32[1]{0}', space=sflag, size = 0x4, scoped, tag = 'scoped memory for tpu_custom_call.1']
    #allocation8 [shape = 'u8[8192]{0}', space=vmem, size = 0x2000, scoped, tag = 'input window, operand 2, single buffered']
    #allocation9 [shape = 'u8[16384]{0}', space=vmem, size = 0x4000, scoped, tag = 'input window, operand 4, single buffered']
    #allocation10 [shape = 's32[1]{0}', space=sflag, size = 0x4, scoped, tag = 'scoped memory for tpu_custom_call.1']
    #allocation11 [shape = 'u8[16384]{0}', space=vmem, size = 0x4000, scoped, tag = 'input window, operand 5, single buffered']
    #allocation12 [shape = 'u8[24576]{0}', space=vmem, size = 0x6000, scoped, tag = 'output window, operand 0, single buffered']
    %12 = vsyncpa [#allocation4], 0
    %13 = vsyncpa [#allocation7], 0
    %14 = vsyncpa [#allocation10], 0
    %15 = vsyncpa [#allocation5], 0
    // Predicated region
    $region2: #{tpu_custom_call.1} parent=1 // pred_check
      _
    $region3: #{tpu_custom_call.1} parent=1 // pred_check_branch
      %17 = sbr.rel (0) target = $region5
    $region4: #{tpu_custom_call.1} parent=1 // pred_region
      %19 = vsyncadd [#allocation4], 0
      %s20 = sshll.u32 %s0, 4
      %s21 = int_to_ptr.hbm [resolvable:$true] %s20
      %s22 = sshll.u32 [#allocation3], 4
      %s23 = int_to_ptr.vmem [resolvable:$true] %s22
      %28 = dma.hbm_to_vmem [thread:$0]  %s21, 768, %s23, [#allocation4], 128, 128, 8
    $region5: #{tpu_custom_call.1} parent=1 // pred_fallthru
      _
    // Predicated region
    $region6: #{tpu_custom_call.1} parent=1 // pred_check
      _
    $region7: #{tpu_custom_call.1} parent=1 // pred_check_branch
      %30 = sbr.rel (0) target = $region9
    $region8: #{tpu_custom_call.1} parent=1 // pred_region
      %32 = vsyncadd [#allocation7], 0
      %s33 = sshll.u32 %s1, 4
      %s34 = int_to_ptr.hbm [resolvable:$true] %s33
      %s35 = sshll.u32 [#allocation6], 4
      %s36 = int_to_ptr.vmem [resolvable:$true] %s35
      %41 = dma.hbm_to_vmem [thread:$0]  %s34, 768, %s36, [#allocation7], 128, 128, 8
    $region9: #{tpu_custom_call.1} parent=1 // pred_fallthru
      _
    // Predicated region
    $region10: #{tpu_custom_call.1} parent=1 // pred_check
      _
    $region11: #{tpu_custom_call.1} parent=1 // pred_check_branch
      %43 = sbr.rel (0) target = $region13
    $region12: #{tpu_custom_call.1} parent=1 // pred_region
      %45 = vsyncadd [#allocation7], 0
      %s46 = sshll.u32 %s2, 4
      %s47 = int_to_ptr.hbm [resolvable:$true] %s46
      %s48 = sshll.u32 [#allocation8], 4
      %s49 = int_to_ptr.vmem [resolvable:$true] %s48
      %54 = dma.hbm_to_vmem [thread:$0]  %s47, 256, %s49, [#allocation7], 128, 128, 8
    $region13: #{tpu_custom_call.1} parent=1 // pred_fallthru
      _
    // Predicated region
    $region14: #{tpu_custom_call.1} parent=1 // pred_check
      _
    $region15: #{tpu_custom_call.1} parent=1 // pred_check_branch
      %56 = sbr.rel (0) target = $region17
    $region16: #{tpu_custom_call.1} parent=1 // pred_region
      _
    $region17: #{tpu_custom_call.1} parent=1 // pred_fallthru
      _
    // Predicated region
    $region18: #{tpu_custom_call.1} parent=1 // pred_check
      _
    $region19: #{tpu_custom_call.1} parent=1 // pred_check_branch
      %58 = sbr.rel (0) target = $region21
    $region20: #{tpu_custom_call.1} parent=1 // pred_region
      %60 = vsyncadd [#allocation10], 0
      %s61 = sshll.u32 %s4, 4
      %s62 = int_to_ptr.hbm [resolvable:$true] %s61
      %s63 = sshll.u32 [#allocation9], 4
      %s64 = int_to_ptr.vmem [resolvable:$true] %s63
      %69 = dma.hbm_to_vmem [thread:$0]  %s62, 512, %s64, [#allocation10], 128, 128, 8
    $region21: #{tpu_custom_call.1} parent=1 // pred_fallthru
      _
    // Predicated region
    $region22: #{tpu_custom_call.1} parent=1 // pred_check
      _
    $region23: #{tpu_custom_call.1} parent=1 // pred_check_branch
      %71 = sbr.rel (0) target = $region25
    $region24: #{tpu_custom_call.1} parent=1 // pred_region
      %73 = vsyncadd [#allocation10], 0
      %s74 = sshll.u32 %s5, 4
      %s75 = int_to_ptr.hbm [resolvable:$true] %s74
      %s76 = sshll.u32 [#allocation11], 4
      %s77 = int_to_ptr.vmem [resolvable:$true] %s76
      %82 = dma.hbm_to_vmem [thread:$0]  %s75, 512, %s77, [#allocation10], 128, 128, 8
    $region25: #{tpu_custom_call.1} parent=1 // pred_fallthru
      _
    // Predicated region
    $region26: #{tpu_custom_call.1} parent=1 // pred_check
      _
    $region27: #{tpu_custom_call.1} parent=1 // pred_check_branch
      %84 = sbr.rel (0) target = $region29
    $region28: #{tpu_custom_call.1} parent=1 // pred_region
      _
    $region29: #{tpu_custom_call.1} parent=1 // pred_fallthru
      _
    // Predicated region
    $region30: #{tpu_custom_call.1} parent=1 // pred_check
      _
    $region31: #{tpu_custom_call.1} parent=1 // pred_check_branch
      %86 = sbr.rel (0) target = $region33
    $region32: #{tpu_custom_call.1} parent=1 // pred_region
      %88 = dma.done [#allocation4], 768
    $region33: #{tpu_custom_call.1} parent=1 // pred_fallthru
      _
    // Predicated region
    $region34: #{tpu_custom_call.1} parent=1 // pred_check
      _
    $region35: #{tpu_custom_call.1} parent=1 // pred_check_branch
      %90 = sbr.rel (0) target = $region37
    $region36: #{tpu_custom_call.1} parent=1 // pred_region
      %92 = dma.done [#allocation7], 768
    $region37: #{tpu_custom_call.1} parent=1 // pred_fallthru
      _
    // Predicated region
    $region38: #{tpu_custom_call.1} parent=1 // pred_check
      _
    $region39: #{tpu_custom_call.1} parent=1 // pred_check_branch
      %94 = sbr.rel (0) target = $region41
    $region40: #{tpu_custom_call.1} parent=1 // pred_region
      %96 = dma.done [#allocation7], 256
    $region41: #{tpu_custom_call.1} parent=1 // pred_fallthru
      _
    // Predicated region
    $region42: #{tpu_custom_call.1} parent=1 // pred_check
      _
    $region43: #{tpu_custom_call.1} parent=1 // pred_check_branch
      %98 = sbr.rel (0) target = $region45
    $region44: #{tpu_custom_call.1} parent=1 // pred_region
      %100 = dma.done [#allocation10], 512
    $region45: #{tpu_custom_call.1} parent=1 // pred_fallthru
      _
    // Predicated region
    $region46: #{tpu_custom_call.1} parent=1 // pred_check
      _
    $region47: #{tpu_custom_call.1} parent=1 // pred_check_branch
      %102 = sbr.rel (0) target = $region49
    $region48: #{tpu_custom_call.1} parent=1 // pred_region
      %104 = dma.done [#allocation10], 512
    $region49: #{tpu_custom_call.1} parent=1 // pred_fallthru
      _
    %v105 = vld [vmem:[#allocation6] sm:$0xff]
    %v106 = vld [vmem:[#allocation6 + $0x8] sm:$0xff]
    %v107 = vld [vmem:[#allocation6 + $0x10] sm:$0xff]
    %v108 = vld [vmem:[#allocation6 + $0x18] sm:$0xff]
    %v109 = vld [vmem:[#allocation6 + $0x20] sm:$0xff]
    %v110 = vld [vmem:[#allocation6 + $0x28] sm:$0xff]
    %v111 = vld [vmem:[#allocation8] sm:$0xff]
    %v112 = vld [vmem:[#allocation8 + $0x8] sm:$0xff]
    %vm113 = vcmask 130048
    %v115 = vsel %vm113, %v105, 0
    %v118 = vsel %vm113, %v106, 0
    %v121 = vsel %vm113, %v107, 0
    %v124 = vsel %vm113, %v108, 0
    %v127 = vsel %vm113, %v109, 0
    %v130 = vsel %vm113, %v110, 0
    %132 = vmatpush.msra.mxu0 0.0
    %133 = vmatpush.msra.mxu0 0.0
    %134 = vmatpush.msra.mxu0 0.0
    %135 = vmatpush.msra.mxu0 0.0
    %136 = vmatpush.msra.mxu0 0.0
    %137 = vmatpush.msra.mxu0 0.0
    %138 = vmatpush.msra.mxu0 0.0
    %139 = vmatpush.msra.mxu0 0.0
    %140 = vmatpush.msra.mxu0 0.0
    %141 = vmatpush.msra.mxu0 0.0
    %142 = vmatpush.msra.mxu0 0.0
    %143 = vmatpush.msra.mxu0 0.0
    %144 = vmatpush.msra.mxu0 0.0
    %145 = vmatpush.msra.mxu0 0.0
    %146 = vmatpush.msra.mxu0 %v112
    %147 = vmatpush.msra.mxu0 %v111
    %148 = vmatmul.f32.gmra.mxu0 %v115
    %v149 = vpop.f32.mrf.mxu0
    %v150 = vadd.f32 0.0, %v149
    %151 = vmatmul.f32.gmra.mxu0 %v118
    %v152 = vpop.f32.mrf.mxu0
    %v153 = vadd.f32 0.0, %v152
    %154 = vmatmul.f32.gmra.mxu0 %v121
    %v155 = vpop.f32.mrf.mxu0
    %v156 = vadd.f32 0.0, %v155
    %157 = vmatmul.f32.gmra.mxu0 %v124
    %v158 = vpop.f32.mrf.mxu0
    %v159 = vadd.f32 0.0, %v158
    %160 = vmatmul.f32.gmra.mxu0 %v127
    %v161 = vpop.f32.mrf.mxu0
    %v162 = vadd.f32 0.0, %v161
    %163 = vmatmul.f32.gmra.mxu0 %v130
    %v164 = vpop.f32.mrf.mxu0
    %v165 = vadd.f32 0.0, %v164
    %166 = vdwg.mxu0
    %v167 = vld [vmem:[#allocation3] sm:$0xff]
    %v168 = vld [vmem:[#allocation3 + $0x8] sm:$0xff]
    %v169 = vld [vmem:[#allocation3 + $0x10] sm:$0xff]
    %v170 = vld [vmem:[#allocation3 + $0x18] sm:$0xff]
    %v171 = vld [vmem:[#allocation3 + $0x20] sm:$0xff]
    %v172 = vld [vmem:[#allocation3 + $0x28] sm:$0xff]
    %vm173 = vcmask 64512
    %v175 = vsel %vm173, %v167, 0
    %177 = vmatpush.msra.mxu0 0.0
    %178 = vmatpush.msra.mxu0 0.0
    %179 = vmatpush.msra.mxu0 0.0
    %180 = vmatpush.msra.mxu0 0.0
    %181 = vmatpush.msra.mxu0 0.0
    %182 = vmatpush.msra.mxu0 0.0
    %183 = vmatpush.msra.mxu0 0.0
    %184 = vmatpush.msra.mxu0 0.0
    %185 = vmatpush.msra.mxu0 0.0
    %186 = vmatpush.msra.mxu0 0.0
    %187 = vmatpush.msra.mxu0 0.0
    %188 = vmatpush.msra.mxu0 0.0
    %189 = vmatpush.msra.mxu0 0.0
    %190 = vmatpush.msra.mxu0 0.0
    %191 = vmatpush.msra.mxu0 0.0
    %192 = vmatpush.msra.mxu0 %v150
    %193 = vmatmul.f32.gmra.mxu0 %v175
    %v194 = vpop.f32.mrf.mxu0
    %v195 = vadd.f32 0.0, %v194
    %196 = vdwg.mxu0
    %v198 = vsel %vm173, %v168, 0
    %200 = vmatpush.msra.mxu0 0.0
    %201 = vmatpush.msra.mxu0 0.0
    %202 = vmatpush.msra.mxu0 0.0
    %203 = vmatpush.msra.mxu0 0.0
    %204 = vmatpush.msra.mxu0 0.0
    %205 = vmatpush.msra.mxu0 0.0
    %206 = vmatpush.msra.mxu0 0.0
    %207 = vmatpush.msra.mxu0 0.0
    %208 = vmatpush.msra.mxu0 0.0
    %209 = vmatpush.msra.mxu0 0.0
    %210 = vmatpush.msra.mxu0 0.0
    %211 = vmatpush.msra.mxu0 0.0
    %212 = vmatpush.msra.mxu0 0.0
    %213 = vmatpush.msra.mxu0 0.0
    %214 = vmatpush.msra.mxu0 0.0
    %215 = vmatpush.msra.mxu0 %v153
    %216 = vmatmul.f32.gmra.mxu0 %v198
    %v217 = vpop.f32.mrf.mxu0
    %v218 = vadd.f32 0.0, %v217
    %219 = vdwg.mxu0
    %v221 = vsel %vm173, %v169, 0
    %223 = vmatpush.msra.mxu0 0.0
    %224 = vmatpush.msra.mxu0 0.0
    %225 = vmatpush.msra.mxu0 0.0
    %226 = vmatpush.msra.mxu0 0.0
    %227 = vmatpush.msra.mxu0 0.0
    %228 = vmatpush.msra.mxu0 0.0
    %229 = vmatpush.msra.mxu0 0.0
    %230 = vmatpush.msra.mxu0 0.0
    %231 = vmatpush.msra.mxu0 0.0
    %232 = vmatpush.msra.mxu0 0.0
    %233 = vmatpush.msra.mxu0 0.0
    %234 = vmatpush.msra.mxu0 0.0
    %235 = vmatpush.msra.mxu0 0.0
    %236 = vmatpush.msra.mxu0 0.0
    %237 = vmatpush.msra.mxu0 0.0
    %238 = vmatpush.msra.mxu0 %v156
    %239 = vmatmul.f32.gmra.mxu0 %v221
    %v240 = vpop.f32.mrf.mxu0
    %v241 = vadd.f32 0.0, %v240
    %242 = vdwg.mxu0
    %v244 = vsel %vm173, %v170, 0
    %246 = vmatpush.msra.mxu0 0.0
    %247 = vmatpush.msra.mxu0 0.0
    %248 = vmatpush.msra.mxu0 0.0
    %249 = vmatpush.msra.mxu0 0.0
    %250 = vmatpush.msra.mxu0 0.0
    %251 = vmatpush.msra.mxu0 0.0
    %252 = vmatpush.msra.mxu0 0.0
    %253 = vmatpush.msra.mxu0 0.0
    %254 = vmatpush.msra.mxu0 0.0
    %255 = vmatpush.msra.mxu0 0.0
    %256 = vmatpush.msra.mxu0 0.0
    %257 = vmatpush.msra.mxu0 0.0
    %258 = vmatpush.msra.mxu0 0.0
    %259 = vmatpush.msra.mxu0 0.0
    %260 = vmatpush.msra.mxu0 0.0
    %261 = vmatpush.msra.mxu0 %v159
    %262 = vmatmul.f32.gmra.mxu0 %v244
    %v263 = vpop.f32.mrf.mxu0
    %v264 = vadd.f32 0.0, %v263
    %265 = vdwg.mxu0
    %v267 = vsel %vm173, %v171, 0
    %269 = vmatpush.msra.mxu0 0.0
    %270 = vmatpush.msra.mxu0 0.0
    %271 = vmatpush.msra.mxu0 0.0
    %272 = vmatpush.msra.mxu0 0.0
    %273 = vmatpush.msra.mxu0 0.0
    %274 = vmatpush.msra.mxu0 0.0
    %275 = vmatpush.msra.mxu0 0.0
    %276 = vmatpush.msra.mxu0 0.0
    %277 = vmatpush.msra.mxu0 0.0
    %278 = vmatpush.msra.mxu0 0.0
    %279 = vmatpush.msra.mxu0 0.0
    %280 = vmatpush.msra.mxu0 0.0
    %281 = vmatpush.msra.mxu0 0.0
    %282 = vmatpush.msra.mxu0 0.0
    %283 = vmatpush.msra.mxu0 0.0
    %284 = vmatpush.msra.mxu0 %v162
    %285 = vmatmul.f32.gmra.mxu0 %v267
    %v286 = vpop.f32.mrf.mxu0
    %v287 = vadd.f32 0.0, %v286
    %288 = vdwg.mxu0
    %v290 = vsel %vm173, %v172, 0
    %292 = vmatpush.msra.mxu0 0.0
    %293 = vmatpush.msra.mxu0 0.0
    %294 = vmatpush.msra.mxu0 0.0
    %295 = vmatpush.msra.mxu0 0.0
    %296 = vmatpush.msra.mxu0 0.0
    %297 = vmatpush.msra.mxu0 0.0
    %298 = vmatpush.msra.mxu0 0.0
    %299 = vmatpush.msra.mxu0 0.0
    %300 = vmatpush.msra.mxu0 0.0
    %301 = vmatpush.msra.mxu0 0.0
    %302 = vmatpush.msra.mxu0 0.0
    %303 = vmatpush.msra.mxu0 0.0
    %304 = vmatpush.msra.mxu0 0.0
    %305 = vmatpush.msra.mxu0 0.0
    %306 = vmatpush.msra.mxu0 0.0
    %307 = vmatpush.msra.mxu0 %v165
    %308 = vmatmul.f32.gmra.mxu0 %v290
    %v309 = vpop.f32.mrf.mxu0
    %v310 = vadd.f32 0.0, %v309
    %311 = vdwg.mxu0
    %v312 = vld [vmem:[%s3] sm:$0x1]
    %v314 = vperm.slane %v312, 0
    %v316 = vadd.f32 %v195, %v314
    %v317 = vadd.f32 %v218, %v314
    %v318 = vadd.f32 %v241, %v314
    %v319 = vadd.f32 %v264, %v314
    %v320 = vadd.f32 %v287, %v314
    %v321 = vadd.f32 %v310, %v314
    %v322 = vmax.f32 %v316, 0.0
    %v323 = vmax.f32 %v317, 0.0
    %v324 = vmax.f32 %v318, 0.0
    %v325 = vmax.f32 %v319, 0.0
    %v326 = vmax.f32 %v320, 0.0
    %v327 = vmax.f32 %v321, 0.0
    %v328 = vld [vmem:[#allocation9] sm:$0xff]
    %v329 = vld [vmem:[#allocation9 + $0x8] sm:$0xff]
    %v330 = vld [vmem:[#allocation9 + $0x10] sm:$0xff]
    %v331 = vld [vmem:[#allocation9 + $0x18] sm:$0xff]
    %v332 = vld [vmem:[%s6] sm:$0x1]
    %v334 = vperm.slane %v332, 0
    %vm336 = vcmask 261120
    %v338 = vsel %vm336, %v322, 0
    %v341 = vsel %vm336, %v323, 0
    %v344 = vsel %vm336, %v324, 0
    %v347 = vsel %vm336, %v325, 0
    %v350 = vsel %vm336, %v326, 0
    %v353 = vsel %vm336, %v327, 0
    %355 = vmatpush.msra.mxu0 0.0
    %356 = vmatpush.msra.mxu0 0.0
    %357 = vmatpush.msra.mxu0 0.0
    %358 = vmatpush.msra.mxu0 0.0
    %359 = vmatpush.msra.mxu0 0.0
    %360 = vmatpush.msra.mxu0 0.0
    %361 = vmatpush.msra.mxu0 0.0
    %362 = vmatpush.msra.mxu0 0.0
    %363 = vmatpush.msra.mxu0 0.0
    %364 = vmatpush.msra.mxu0 0.0
    %365 = vmatpush.msra.mxu0 0.0
    %366 = vmatpush.msra.mxu0 0.0
    %367 = vmatpush.msra.mxu0 %v331
    %368 = vmatpush.msra.mxu0 %v330
    %369 = vmatpush.msra.mxu0 %v329
    %370 = vmatpush.msra.mxu0 %v328
    %371 = vmatmul.f32.gmra.mxu0 %v338
    %v372 = vpop.f32.mrf.mxu0
    %v373 = vadd.f32 %v334, %v372
    %374 = vmatmul.f32.gmra.mxu0 %v341
    %v375 = vpop.f32.mrf.mxu0
    %v376 = vadd.f32 %v334, %v375
    %377 = vmatmul.f32.gmra.mxu0 %v344
    %v378 = vpop.f32.mrf.mxu0
    %v379 = vadd.f32 %v334, %v378
    %380 = vmatmul.f32.gmra.mxu0 %v347
    %v381 = vpop.f32.mrf.mxu0
    %v382 = vadd.f32 %v334, %v381
    %383 = vmatmul.f32.gmra.mxu0 %v350
    %v384 = vpop.f32.mrf.mxu0
    %v385 = vadd.f32 %v334, %v384
    %386 = vmatmul.f32.gmra.mxu0 %v353
    %v387 = vpop.f32.mrf.mxu0
    %v388 = vadd.f32 %v334, %v387
    %389 = vdwg.mxu0
    %390 = vst [vmem:[#allocation2] sm:$0xff] %v373
    %391 = vst [vmem:[#allocation2 + $0x8] sm:$0xff] %v376
    %392 = vst [vmem:[#allocation2 + $0x10] sm:$0xff] %v379
    %393 = vst [vmem:[#allocation2 + $0x18] sm:$0xff] %v382
    %394 = vst [vmem:[#allocation2 + $0x20] sm:$0xff] %v385
    %395 = vst [vmem:[#allocation2 + $0x28] sm:$0xff] %v388
    %v396 = vlaneseq
    %v397 = vand.u32 %v396, 127
    %vm398 = vcmp.ge.s32.totalorder %v397, 64
    %vm399 = vcmp.lt.s32.totalorder %v397, 96
    %vm400 = vmand %vm398, %vm399
    %v401 = vld [vmem:[#allocation2] sm:$0xff]
    %v402 = vld [vmem:[#allocation11] sm:$0xff]
    %v403 = vld [vmem:[#allocation11 + $0x8] sm:$0xff]
    %v404 = vld [vmem:[#allocation11 + $0x10] sm:$0xff]
    %v405 = vld [vmem:[#allocation11 + $0x18] sm:$0xff]
    %v407 = vsel %vm336, 0.0, 0
    %409 = vmatpush.msra.mxu0 0.0
    %410 = vmatpush.msra.mxu0 0.0
    %411 = vmatpush.msra.mxu0 0.0
    %412 = vmatpush.msra.mxu0 0.0
    %413 = vmatpush.msra.mxu0 0.0
    %414 = vmatpush.msra.mxu0 0.0
    %415 = vmatpush.msra.mxu0 0.0
    %416 = vmatpush.msra.mxu0 0.0
    %417 = vmatpush.msra.mxu0 0.0
    %418 = vmatpush.msra.mxu0 0.0
    %419 = vmatpush.msra.mxu0 0.0
    %420 = vmatpush.msra.mxu0 0.0
    %421 = vmatpush.msra.mxu0 %v405
    %422 = vmatpush.msra.mxu0 %v404
    %423 = vmatpush.msra.mxu0 %v403
    %424 = vmatpush.msra.mxu0 %v402
    %425 = vmatmul.f32.gmra.mxu0 %v407
    %v426 = vpop.f32.mrf.mxu0
    %v427 = vadd.f32 0.0, %v426
    %428 = vdwg.mxu0
    %v429 = vadd.f32 %v401, %v427
    %v430 = vtanh.pop %v429
    %v431 = vxor.u32 %v429, 2147483648
    %v432 = vmul.f32 %v431, 1.442695
    %v433 = vpow.pop %v432
    %v434 = vadd.f32 %v433, 1.0
    %v435 = vrcp.pop %v434
    %v436 = vmul.f32 %v434, %v435
    %v437 = vsub.f32 1.0, %v436
    %v438 = vmul.f32 %v435, %v437
    %v439 = vadd.f32 %v435, %v438
    %vm440 = vweird.f32 %v434
    %vm441 = vweird.f32 %v435
    %vm442 = vmor %vm440, %vm441
    %v443 = vsel %vm442, %v435, %v439
    %v444 = vand.u32 2147483647, %v434
    %vm445 = vcmp.eq.f32.partialorder %v444, 8.507059e+37
    %v446 = vand.u32 %v434, 2147483648
    %v447 = vor.u32 1.1754944e-38, %v446
    %v448 = vsel %vm445, %v447, %v443
    %v449 = vmul.f32 1.0, %v448
    %v450 = vsel %vm400, %v430, %v449
    %v451 = vmul.f32 %v450, 0.0
    %453 = vrot.lane.b32.xlu0 %v450, 64
    %v454 = vpop.permute.xlu0 %453
    %v456 = vmul.f32 %v450, %v454
    %458 = vrot.lane.b32.xlu0 %v456, 32
    %v459 = vpop.permute.xlu0 %458
    %v461 = vadd.f32 %v451, %v459
    %v462 = vtanh.pop %v461
    %464 = vrot.lane.b32.xlu0 %v462, 64
    %v465 = vpop.permute.xlu0 %464
    %v467 = vmul.f32 %v450, %v465
    %469 = vrot.lane.b32.xlu0 %v467, 32
    %v470 = vpop.permute.xlu0 %469
    %472 = vst.msk [vmem:[#allocation12] sm:$0xff] %vm336, %v470
    %s473 = scalar_lea.vmem [#allocation2], 8
    %v474 = vld [vmem:[%s473] sm:$0xff]
    %v475 = vld [vmem:[#allocation11] sm:$0xff]
    %v476 = vld [vmem:[#allocation11 + $0x8] sm:$0xff]
    %v477 = vld [vmem:[#allocation11 + $0x10] sm:$0xff]
    %v478 = vld [vmem:[#allocation11 + $0x18] sm:$0xff]
    %v479 = vsel %vm336, %v470, 0
    %481 = vmatpush.msra.mxu0 0.0
    %482 = vmatpush.msra.mxu0 0.0
    %483 = vmatpush.msra.mxu0 0.0
    %484 = vmatpush.msra.mxu0 0.0
    %485 = vmatpush.msra.mxu0 0.0
    %486 = vmatpush.msra.mxu0 0.0
    %487 = vmatpush.msra.mxu0 0.0
    %488 = vmatpush.msra.mxu0 0.0
    %489 = vmatpush.msra.mxu0 0.0
    %490 = vmatpush.msra.mxu0 0.0
    %491 = vmatpush.msra.mxu0 0.0
    %492 = vmatpush.msra.mxu0 0.0
    %493 = vmatpush.msra.mxu0 %v478
    %494 = vmatpush.msra.mxu0 %v477
    %495 = vmatpush.msra.mxu0 %v476
    %496 = vmatpush.msra.mxu0 %v475
    %497 = vmatmul.f32.gmra.mxu0 %v479
    %v498 = vpop.f32.mrf.mxu0
    %v499 = vadd.f32 0.0, %v498
    %500 = vdwg.mxu0
    %v501 = vadd.f32 %v474, %v499
    %v502 = vtanh.pop %v501
    %v503 = vxor.u32 %v501, 2147483648
    %v504 = vmul.f32 %v503, 1.442695
    %v505 = vpow.pop %v504
    %v506 = vadd.f32 %v505, 1.0
    %v507 = vrcp.pop %v506
    %v508 = vmul.f32 %v506, %v507
    %v509 = vsub.f32 1.0, %v508
    %v510 = vmul.f32 %v507, %v509
    %v511 = vadd.f32 %v507, %v510
    %vm512 = vweird.f32 %v506
    %vm513 = vweird.f32 %v507
    %vm514 = vmor %vm512, %vm513
    %v515 = vsel %vm514, %v507, %v511
    %v516 = vand.u32 2147483647, %v506
    %vm517 = vcmp.eq.f32.partialorder %v516, 8.507059e+37
    %v518 = vand.u32 %v506, 2147483648
    %v519 = vor.u32 1.1754944e-38, %v518
    %v520 = vsel %vm517, %v519, %v515
    %v521 = vmul.f32 1.0, %v520
    %v522 = vsel %vm400, %v502, %v521
    %v523 = vmul.f32 %v522, %v461
    %525 = vrot.lane.b32.xlu0 %v522, 64
    %v526 = vpop.permute.xlu0 %525
    %v528 = vmul.f32 %v522, %v526
    %530 = vrot.lane.b32.xlu0 %v528, 32
    %v531 = vpop.permute.xlu0 %530
    %v533 = vadd.f32 %v523, %v531
    %v534 = vtanh.pop %v533
    %536 = vrot.lane.b32.xlu0 %v534, 64
    %v537 = vpop.permute.xlu0 %536
    %v539 = vmul.f32 %v522, %v537
    %541 = vrot.lane.b32.xlu0 %v539, 32
    %v542 = vpop.permute.xlu0 %541
    %s544 = scalar_lea.vmem [#allocation12], 8
    %545 = vst.msk [vmem:[%s544] sm:$0xff] %vm336, %v542
    %s546 = scalar_lea.vmem [#allocation2], 16
    %v547 = vld [vmem:[%s546] sm:$0xff]
    %v548 = vld [vmem:[#allocation11] sm:$0xff]
    %v549 = vld [vmem:[#allocation11 + $0x8] sm:$0xff]
    %v550 = vld [vmem:[#allocation11 + $0x10] sm:$0xff]
    %v551 = vld [vmem:[#allocation11 + $0x18] sm:$0xff]
    %v552 = vsel %vm336, %v542, 0
    %554 = vmatpush.msra.mxu0 0.0
    %555 = vmatpush.msra.mxu0 0.0
    %556 = vmatpush.msra.mxu0 0.0
    %557 = vmatpush.msra.mxu0 0.0
    %558 = vmatpush.msra.mxu0 0.0
    %559 = vmatpush.msra.mxu0 0.0
    %560 = vmatpush.msra.mxu0 0.0
    %561 = vmatpush.msra.mxu0 0.0
    %562 = vmatpush.msra.mxu0 0.0
    %563 = vmatpush.msra.mxu0 0.0
    %564 = vmatpush.msra.mxu0 0.0
    %565 = vmatpush.msra.mxu0 0.0
    %566 = vmatpush.msra.mxu0 %v551
    %567 = vmatpush.msra.mxu0 %v550
    %568 = vmatpush.msra.mxu0 %v549
    %569 = vmatpush.msra.mxu0 %v548
    %570 = vmatmul.f32.gmra.mxu0 %v552
    %v571 = vpop.f32.mrf.mxu0
    %v572 = vadd.f32 0.0, %v571
    %573 = vdwg.mxu0
    %v574 = vadd.f32 %v547, %v572
    %v575 = vtanh.pop %v574
    %v576 = vxor.u32 %v574, 2147483648
    %v577 = vmul.f32 %v576, 1.442695
    %v578 = vpow.pop %v577
    %v579 = vadd.f32 %v578, 1.0
    %v580 = vrcp.pop %v579
    %v581 = vmul.f32 %v579, %v580
    %v582 = vsub.f32 1.0, %v581
    %v583 = vmul.f32 %v580, %v582
    %v584 = vadd.f32 %v580, %v583
    %vm585 = vweird.f32 %v579
    %vm586 = vweird.f32 %v580
    %vm587 = vmor %vm585, %vm586
    %v588 = vsel %vm587, %v580, %v584
    %v589 = vand.u32 2147483647, %v579
    %vm590 = vcmp.eq.f32.partialorder %v589, 8.507059e+37
    %v591 = vand.u32 %v579, 2147483648
    %v592 = vor.u32 1.1754944e-38, %v591
    %v593 = vsel %vm590, %v592, %v588
    %v594 = vmul.f32 1.0, %v593
    %v595 = vsel %vm400, %v575, %v594
    %v596 = vmul.f32 %v595, %v533
    %598 = vrot.lane.b32.xlu0 %v595, 64
    %v599 = vpop.permute.xlu0 %598
    %v601 = vmul.f32 %v595, %v599
    %603 = vrot.lane.b32.xlu0 %v601, 32
    %v604 = vpop.permute.xlu0 %603
    %v606 = vadd.f32 %v596, %v604
    %v607 = vtanh.pop %v606
    %609 = vrot.lane.b32.xlu0 %v607, 64
    %v610 = vpop.permute.xlu0 %609
    %v612 = vmul.f32 %v595, %v610
    %614 = vrot.lane.b32.xlu0 %v612, 32
    %v615 = vpop.permute.xlu0 %614
    %s617 = scalar_lea.vmem [#allocation12], 16
    %618 = vst.msk [vmem:[%s617] sm:$0xff] %vm336, %v615
    %s619 = scalar_lea.vmem [#allocation2], 24
    %v620 = vld [vmem:[%s619] sm:$0xff]
    %v621 = vld [vmem:[#allocation11] sm:$0xff]
    %v622 = vld [vmem:[#allocation11 + $0x8] sm:$0xff]
    %v623 = vld [vmem:[#allocation11 + $0x10] sm:$0xff]
    %v624 = vld [vmem:[#allocation11 + $0x18] sm:$0xff]
    %v625 = vsel %vm336, %v615, 0
    %627 = vmatpush.msra.mxu0 0.0
    %628 = vmatpush.msra.mxu0 0.0
    %629 = vmatpush.msra.mxu0 0.0
    %630 = vmatpush.msra.mxu0 0.0
    %631 = vmatpush.msra.mxu0 0.0
    %632 = vmatpush.msra.mxu0 0.0
    %633 = vmatpush.msra.mxu0 0.0
    %634 = vmatpush.msra.mxu0 0.0
    %635 = vmatpush.msra.mxu0 0.0
    %636 = vmatpush.msra.mxu0 0.0
    %637 = vmatpush.msra.mxu0 0.0
    %638 = vmatpush.msra.mxu0 0.0
    %639 = vmatpush.msra.mxu0 %v624
    %640 = vmatpush.msra.mxu0 %v623
    %641 = vmatpush.msra.mxu0 %v622
    %642 = vmatpush.msra.mxu0 %v621
    %643 = vmatmul.f32.gmra.mxu0 %v625
    %v644 = vpop.f32.mrf.mxu0
    %v645 = vadd.f32 0.0, %v644
    %646 = vdwg.mxu0
    %v647 = vadd.f32 %v620, %v645
    %v648 = vtanh.pop %v647
    %v649 = vxor.u32 %v647, 2147483648
    %v650 = vmul.f32 %v649, 1.442695
    %v651 = vpow.pop %v650
    %v652 = vadd.f32 %v651, 1.0
    %v653 = vrcp.pop %v652
    %v654 = vmul.f32 %v652, %v653
    %v655 = vsub.f32 1.0, %v654
    %v656 = vmul.f32 %v653, %v655
    %v657 = vadd.f32 %v653, %v656
    %vm658 = vweird.f32 %v652
    %vm659 = vweird.f32 %v653
    %vm660 = vmor %vm658, %vm659
    %v661 = vsel %vm660, %v653, %v657
    %v662 = vand.u32 2147483647, %v652
    %vm663 = vcmp.eq.f32.partialorder %v662, 8.507059e+37
    %v664 = vand.u32 %v652, 2147483648
    %v665 = vor.u32 1.1754944e-38, %v664
    %v666 = vsel %vm663, %v665, %v661
    %v667 = vmul.f32 1.0, %v666
    %v668 = vsel %vm400, %v648, %v667
    %v669 = vmul.f32 %v668, %v606
    %671 = vrot.lane.b32.xlu0 %v668, 64
    %v672 = vpop.permute.xlu0 %671
    %v674 = vmul.f32 %v668, %v672
    %676 = vrot.lane.b32.xlu0 %v674, 32
    %v677 = vpop.permute.xlu0 %676
    %v679 = vadd.f32 %v669, %v677
    %v680 = vtanh.pop %v679
    %682 = vrot.lane.b32.xlu0 %v680, 64
    %v683 = vpop.permute.xlu0 %682
    %v685 = vmul.f32 %v668, %v683
    %687 = vrot.lane.b32.xlu0 %v685, 32
    %v688 = vpop.permute.xlu0 %687
    %s690 = scalar_lea.vmem [#allocation12], 24
    %691 = vst.msk [vmem:[%s690] sm:$0xff] %vm336, %v688
    %s692 = scalar_lea.vmem [#allocation2], 32
    %v693 = vld [vmem:[%s692] sm:$0xff]
    %v694 = vld [vmem:[#allocation11] sm:$0xff]
    %v695 = vld [vmem:[#allocation11 + $0x8] sm:$0xff]
    %v696 = vld [vmem:[#allocation11 + $0x10] sm:$0xff]
    %v697 = vld [vmem:[#allocation11 + $0x18] sm:$0xff]
    %v698 = vsel %vm336, %v688, 0
    %700 = vmatpush.msra.mxu0 0.0
    %701 = vmatpush.msra.mxu0 0.0
    %702 = vmatpush.msra.mxu0 0.0
    %703 = vmatpush.msra.mxu0 0.0
    %704 = vmatpush.msra.mxu0 0.0
    %705 = vmatpush.msra.mxu0 0.0
    %706 = vmatpush.msra.mxu0 0.0
    %707 = vmatpush.msra.mxu0 0.0
    %708 = vmatpush.msra.mxu0 0.0
    %709 = vmatpush.msra.mxu0 0.0
    %710 = vmatpush.msra.mxu0 0.0
    %711 = vmatpush.msra.mxu0 0.0
    %712 = vmatpush.msra.mxu0 %v697
    %713 = vmatpush.msra.mxu0 %v696
    %714 = vmatpush.msra.mxu0 %v695
    %715 = vmatpush.msra.mxu0 %v694
    %716 = vmatmul.f32.gmra.mxu0 %v698
    %v717 = vpop.f32.mrf.mxu0
    %v718 = vadd.f32 0.0, %v717
    %719 = vdwg.mxu0
    %v720 = vadd.f32 %v693, %v718
    %v721 = vtanh.pop %v720
    %v722 = vxor.u32 %v720, 2147483648
    %v723 = vmul.f32 %v722, 1.442695
    %v724 = vpow.pop %v723
    %v725 = vadd.f32 %v724, 1.0
    %v726 = vrcp.pop %v725
    %v727 = vmul.f32 %v725, %v726
    %v728 = vsub.f32 1.0, %v727
    %v729 = vmul.f32 %v726, %v728
    %v730 = vadd.f32 %v726, %v729
    %vm731 = vweird.f32 %v725
    %vm732 = vweird.f32 %v726
    %vm733 = vmor %vm731, %vm732
    %v734 = vsel %vm733, %v726, %v730
    %v735 = vand.u32 2147483647, %v725
    %vm736 = vcmp.eq.f32.partialorder %v735, 8.507059e+37
    %v737 = vand.u32 %v725, 2147483648
    %v738 = vor.u32 1.1754944e-38, %v737
    %v739 = vsel %vm736, %v738, %v734
    %v740 = vmul.f32 1.0, %v739
    %v741 = vsel %vm400, %v721, %v740
    %v742 = vmul.f32 %v741, %v679
    %744 = vrot.lane.b32.xlu0 %v741, 64
    %v745 = vpop.permute.xlu0 %744
    %v747 = vmul.f32 %v741, %v745
    %749 = vrot.lane.b32.xlu0 %v747, 32
    %v750 = vpop.permute.xlu0 %749
    %v752 = vadd.f32 %v742, %v750
    %v753 = vtanh.pop %v752
    %755 = vrot.lane.b32.xlu0 %v753, 64
    %v756 = vpop.permute.xlu0 %755
    %v758 = vmul.f32 %v741, %v756
    %760 = vrot.lane.b32.xlu0 %v758, 32
    %v761 = vpop.permute.xlu0 %760
    %s763 = scalar_lea.vmem [#allocation12], 32
    %764 = vst.msk [vmem:[%s763] sm:$0xff] %vm336, %v761
    %s765 = scalar_lea.vmem [#allocation2], 40
    %v766 = vld [vmem:[%s765] sm:$0xff]
    %v767 = vld [vmem:[#allocation11] sm:$0xff]
    %v768 = vld [vmem:[#allocation11 + $0x8] sm:$0xff]
    %v769 = vld [vmem:[#allocation11 + $0x10] sm:$0xff]
    %v770 = vld [vmem:[#allocation11 + $0x18] sm:$0xff]
    %v771 = vsel %vm336, %v761, 0
    %773 = vmatpush.msra.mxu0 0.0
    %774 = vmatpush.msra.mxu0 0.0
    %775 = vmatpush.msra.mxu0 0.0
    %776 = vmatpush.msra.mxu0 0.0
    %777 = vmatpush.msra.mxu0 0.0
    %778 = vmatpush.msra.mxu0 0.0
    %779 = vmatpush.msra.mxu0 0.0
    %780 = vmatpush.msra.mxu0 0.0
    %781 = vmatpush.msra.mxu0 0.0
    %782 = vmatpush.msra.mxu0 0.0
    %783 = vmatpush.msra.mxu0 0.0
    %784 = vmatpush.msra.mxu0 0.0
    %785 = vmatpush.msra.mxu0 %v770
    %786 = vmatpush.msra.mxu0 %v769
    %787 = vmatpush.msra.mxu0 %v768
    %788 = vmatpush.msra.mxu0 %v767
    %789 = vmatmul.f32.gmra.mxu0 %v771
    %v790 = vpop.f32.mrf.mxu0
    %v791 = vadd.f32 0.0, %v790
    %792 = vdwg.mxu0
    %v793 = vadd.f32 %v766, %v791
    %v794 = vtanh.pop %v793
    %v795 = vxor.u32 %v793, 2147483648
    %v796 = vmul.f32 %v795, 1.442695
    %v797 = vpow.pop %v796
    %v798 = vadd.f32 %v797, 1.0
    %v799 = vrcp.pop %v798
    %v800 = vmul.f32 %v798, %v799
    %v801 = vsub.f32 1.0, %v800
    %v802 = vmul.f32 %v799, %v801
    %v803 = vadd.f32 %v799, %v802
    %vm804 = vweird.f32 %v798
    %vm805 = vweird.f32 %v799
    %vm806 = vmor %vm804, %vm805
    %v807 = vsel %vm806, %v799, %v803
    %v808 = vand.u32 2147483647, %v798
    %vm809 = vcmp.eq.f32.partialorder %v808, 8.507059e+37
    %v810 = vand.u32 %v798, 2147483648
    %v811 = vor.u32 1.1754944e-38, %v810
    %v812 = vsel %vm809, %v811, %v807
    %v813 = vmul.f32 1.0, %v812
    %v814 = vsel %vm400, %v794, %v813
    %v815 = vmul.f32 %v814, %v752
    %817 = vrot.lane.b32.xlu0 %v814, 64
    %v818 = vpop.permute.xlu0 %817
    %v820 = vmul.f32 %v814, %v818
    %822 = vrot.lane.b32.xlu0 %v820, 32
    %v823 = vpop.permute.xlu0 %822
    %v825 = vadd.f32 %v815, %v823
    %v826 = vtanh.pop %v825
    %828 = vrot.lane.b32.xlu0 %v826, 64
    %v829 = vpop.permute.xlu0 %828
    %v831 = vmul.f32 %v814, %v829
    %833 = vrot.lane.b32.xlu0 %v831, 32
    %v834 = vpop.permute.xlu0 %833
    %s836 = scalar_lea.vmem [#allocation12], 40
    %837 = vst.msk [vmem:[%s836] sm:$0xff] %vm336, %v834
    // Predicated region
    $region50: #{tpu_custom_call.1} parent=1 // pred_check
      _
    $region51: #{tpu_custom_call.1} parent=1 // pred_check_branch
      %839 = sbr.rel (0) target = $region53
    $region52: #{tpu_custom_call.1} parent=1 // pred_region
      %841 = vsyncadd [#allocation5], 0
      %s842 = sshll.u32 [#allocation12], 4
      %s843 = int_to_ptr.vmem [resolvable:$true] %s842
      %s844 = sshll.u32 %s7, 4
      %s845 = int_to_ptr.hbm [resolvable:$true] %s844
      %850 = dma.vmem_to_hbm [thread:$0]  %s843, 768, %s845, [#allocation5], 128, 128, 8
    $region53: #{tpu_custom_call.1} parent=1 // pred_fallthru
      _
    // Predicated region
    $region54: #{tpu_custom_call.1} parent=1 // pred_check
      _
    $region55: #{tpu_custom_call.1} parent=1 // pred_check_branch
      %852 = sbr.rel (0) target = $region57
    $region56: #{tpu_custom_call.1} parent=1 // pred_region
      %854 = dma.done [#allocation5], 768
    $region57: #{tpu_custom_call.1} parent=1 // pred_fallthru
      _
    %855 = vsyncpa [#allocation4], 1
    %856 = vsyncpa [#allocation7], 1
    %857 = vsyncpa [#allocation10], 1
    %858 = vsyncpa [#allocation5], 1

</llo_original>
